<compile_context>
chip_gen: v7x
topology: tpu7x:2x2x1
jax: 0.10.0
libtpu: 0.0.40
codegen_flags: <defaults>
</compile_context>

<pallas_src>
import jax
import jax.numpy as jnp
from jax.experimental import pallas as pl
from jax.experimental.pallas import tpu as pltpu

_LANES = 128
_TILE_ROWS = 2048  # (2048, 128) f32 tile = 1 MiB per input; 4 in x 2 bufs ~ 8 MiB


def _kld_kernel(mu_q_ref, sig_q_ref, mu_p_ref, sig_p_ref, out_ref):
    mu_q = mu_q_ref[...].astype(jnp.float32)
    sig_q = sig_q_ref[...].astype(jnp.float32)
    mu_p = mu_p_ref[...].astype(jnp.float32)
    sig_p = sig_p_ref[...].astype(jnp.float32)

    # EUP-lean formulation: 1 exact reciprocal + 1 log per element.
    inv_p = 1.0 / sig_p
    r = sig_q * inv_p
    m = (mu_q - mu_p) * inv_p
    kl = 0.5 * (r * r + m * m) - jnp.log(r) - 0.5

    # Per-block partial sum, reduced only to an (8, 128) vreg-shaped tile:
    # elementwise VPU adds across sublane groups; cross-lane reduce is deferred
    # to the wrapper.
    rows, lanes = kl.shape
    out_ref[...] = jnp.sum(kl.reshape(rows // 8, 8, lanes), axis=0)


def kld_pallas(mu_q, sig_q, mu_p, sig_p):
    """KL(Normal(mu_q, sig_q) || Normal(mu_p, sig_p)).sum(dim=1).mean() -> f32 scalar."""
    assert mu_q.shape == sig_q.shape == mu_p.shape == sig_p.shape
    B = mu_q.shape[0]
    n = mu_q.size

    # Lane-dense layout: flatten to rows of 128 lanes, sublane-align to 8.
    rows = -(-n // _LANES)
    rows = -(-rows // 8) * 8
    tile_rows = min(_TILE_ROWS, rows)
    rows_padded = -(-rows // tile_rows) * tile_rows
    n_padded = rows_padded * _LANES
    grid = rows_padded // tile_rows

    def _prep(x, pad_value):
        flat = x.reshape(-1)
        if n_padded > n:
            # Pad with parameters whose KL contribution is exactly 0
            # (mu=0, sigma=1 on both sides) -> no masking needed in-kernel.
            flat = jnp.pad(flat, (0, n_padded - n), constant_values=pad_value)
        return flat.reshape(rows_padded, _LANES)

    mu_q_p = _prep(mu_q, 0.0)
    sig_q_p = _prep(sig_q, 1.0)
    mu_p_p = _prep(mu_p, 0.0)
    sig_p_p = _prep(sig_p, 1.0)

    in_spec = pl.BlockSpec((tile_rows, _LANES), lambda i: (i, 0))
    out_spec = pl.BlockSpec((8, _LANES), lambda i: (i, 0))

    partials = pl.pallas_call(
        _kld_kernel,
        out_shape=jax.ShapeDtypeStruct((grid * 8, _LANES), jnp.float32),
        grid=(grid,),
        in_specs=[in_spec, in_spec, in_spec, in_spec],
        out_specs=out_spec,
        compiler_params=pltpu.CompilerParams(
            dimension_semantics=("parallel",),
        ),
    )(mu_q_p, sig_q_p, mu_p_p, sig_p_p)

    # Final tiny cross-lane reduction + mean over the *original* batch size.
    return jnp.sum(partials) / jnp.float32(B)


def kld_reference(mu_q, sig_q, mu_p, sig_p):
    mu_q = mu_q.astype(jnp.float32)
    sig_q = sig_q.astype(jnp.float32)
    mu_p = mu_p.astype(jnp.float32)
    sig_p = sig_p.astype(jnp.float32)
    kl = (jnp.log(sig_p / sig_q)
          + (sig_q ** 2 + (mu_q - mu_p) ** 2) / (2.0 * sig_p ** 2)
          - 0.5)
    return kl.sum(axis=1).mean()


if __name__ == "__main__":
    key = jax.random.PRNGKey(0)
    B, D = 4, 32  # small batch / latent dim consistent with the module's use

    k1, k2, k3, k4 = jax.random.split(key, 4)
    mu_q = jax.random.normal(k1, (B, D), dtype=jnp.float32)
    sig_q = jnp.abs(jax.random.normal(k2, (B, D), dtype=jnp.float32)) * 0.5 + 0.5
    mu_p = jax.random.normal(k3, (B, D), dtype=jnp.float32)
    sig_p = jnp.abs(jax.random.normal(k4, (B, D), dtype=jnp.float32)) * 0.5 + 0.5

    out = kld_pallas(mu_q, sig_q, mu_p, sig_p)
    jax.block_until_ready(out)

    ref = kld_reference(mu_q, sig_q, mu_p, sig_p)
    assert jnp.allclose(out, ref, rtol=1e-5, atol=1e-5), (out, ref)

    print("KERNEL_OK")
</pallas_src>

<mosaic_0001>
module attributes {stable_mosaic.version = 11 : i64} {
  func.func @_kld_kernel(%arg0: i32, %arg1: memref<8x128xf32, #tpu.memory_space<vmem>>, %arg2: memref<8x128xf32, #tpu.memory_space<vmem>>, %arg3: memref<8x128xf32, #tpu.memory_space<vmem>>, %arg4: memref<8x128xf32, #tpu.memory_space<vmem>>, %arg5: memref<8x128xf32, #tpu.memory_space<vmem>>) attributes {dimension_semantics = [#tpu.dimension_semantics<parallel>], iteration_bounds = array<i64: 1>, scalar_prefetch = 0 : i64, scratch_operands = 0 : i64, tpu.core_type = #tpu.core_type<tc>, window_params = [{transform_indices = @transform_0, window_bounds = array<i64: 8, 128>}, {transform_indices = @transform_1, window_bounds = array<i64: 8, 128>}, {transform_indices = @transform_2, window_bounds = array<i64: 8, 128>}, {transform_indices = @transform_3, window_bounds = array<i64: 8, 128>}, {transform_indices = @transform_4, window_bounds = array<i64: 8, 128>}]} {
    %c0 = arith.constant 0 : index
    %c0_0 = arith.constant 0 : index
    %0 = vector.load %arg1[%c0, %c0_0] : memref<8x128xf32, #tpu.memory_space<vmem>>, vector<8x128xf32>
    %c0_1 = arith.constant 0 : index
    %c0_2 = arith.constant 0 : index
    %1 = vector.load %arg2[%c0_1, %c0_2] : memref<8x128xf32, #tpu.memory_space<vmem>>, vector<8x128xf32>
    %c0_3 = arith.constant 0 : index
    %c0_4 = arith.constant 0 : index
    %2 = vector.load %arg3[%c0_3, %c0_4] : memref<8x128xf32, #tpu.memory_space<vmem>>, vector<8x128xf32>
    %c0_5 = arith.constant 0 : index
    %c0_6 = arith.constant 0 : index
    %3 = vector.load %arg4[%c0_5, %c0_6] : memref<8x128xf32, #tpu.memory_space<vmem>>, vector<8x128xf32>
    %cst = arith.constant 1.000000e+00 : f32
    %4 = vector.broadcast %cst : f32 to vector<8x128xf32>
    %5 = arith.divf %4, %3 : vector<8x128xf32>
    %6 = arith.mulf %1, %5 : vector<8x128xf32>
    %7 = arith.subf %0, %2 : vector<8x128xf32>
    %8 = arith.mulf %7, %5 : vector<8x128xf32>
    %9 = arith.mulf %6, %6 : vector<8x128xf32>
    %10 = arith.mulf %8, %8 : vector<8x128xf32>
    %11 = arith.addf %9, %10 : vector<8x128xf32>
    %cst_7 = arith.constant 5.000000e-01 : f32
    %12 = vector.broadcast %cst_7 : f32 to vector<8x128xf32>
    %13 = arith.mulf %12, %11 : vector<8x128xf32>
    %14 = math.log %6 : vector<8x128xf32>
    %15 = arith.subf %13, %14 : vector<8x128xf32>
    %cst_8 = arith.constant 5.000000e-01 : f32
    %16 = vector.broadcast %cst_8 : f32 to vector<8x128xf32>
    %17 = arith.subf %15, %16 : vector<8x128xf32>
    %18 = vector.shape_cast %17 : vector<8x128xf32> to vector<1x8x128xf32>
    %cst_9 = arith.constant dense<0.000000e+00> : vector<8x128xf32>
    %19 = vector.multi_reduction <add>, %18, %cst_9 [0] : vector<1x8x128xf32> to vector<8x128xf32>
    %c0_10 = arith.constant 0 : index
    %c0_11 = arith.constant 0 : index
    %20 = vector.load %arg5[%c0_10, %c0_11] : memref<8x128xf32, #tpu.memory_space<vmem>>, vector<8x128xf32>
    tpu.vector_store %arg5[%c0_10, %c0_11], %19 {strides = array<i32>} : memref<8x128xf32, #tpu.memory_space<vmem>>, vector<8x128xf32>,
    return
  }
  func.func @transform_0(%arg0: i32) -> (i32, i32) {
    %c0_i32 = arith.constant 0 : i32
    %c0_i32_0 = arith.constant 0 : i32
    return %arg0, %c0_i32 : i32, i32
  }
  func.func @transform_1(%arg0: i32) -> (i32, i32) {
    %c0_i32 = arith.constant 0 : i32
    %c0_i32_0 = arith.constant 0 : i32
    return %arg0, %c0_i32 : i32, i32
  }
  func.func @transform_2(%arg0: i32) -> (i32, i32) {
    %c0_i32 = arith.constant 0 : i32
    %c0_i32_0 = arith.constant 0 : i32
    return %arg0, %c0_i32 : i32, i32
  }
  func.func @transform_3(%arg0: i32) -> (i32, i32) {
    %c0_i32 = arith.constant 0 : i32
    %c0_i32_0 = arith.constant 0 : i32
    return %arg0, %c0_i32 : i32, i32
  }
  func.func @transform_4(%arg0: i32) -> (i32, i32) {
    %c0_i32 = arith.constant 0 : i32
    %c0_i32_0 = arith.constant 0 : i32
    return %arg0, %c0_i32 : i32, i32
  }
}

</mosaic_0001>

<llo_original>
// kernel: tpu_custom_call.1
$region0: #{tpu_custom_call.1}
  #allocation0 [shape = 'u32[]', space=smem, size = 0x4, offset = 0x4, fixed_abs, tag = 'smem constant byte address 0x4 - core index']
  #allocation1 [shape = 'u32[144,128]{1,0:T(1,128)}', space=vmem, size = 0x12000, scoped, tag = 'internal scratch']
  %s0 = inlined_call_operand.hbm [shape: f32[8,128], index: 0, kind: input, shape index: {}]
  %s1 = inlined_call_operand.hbm [shape: f32[8,128], index: 1, kind: input, shape index: {}]
  %s2 = inlined_call_operand.hbm [shape: f32[8,128], index: 2, kind: input, shape index: {}]
  %s3 = inlined_call_operand.vmem [shape: f32[8,128], index: 3, kind: input, shape index: {}]
  %s4 = inlined_call_operand.hbm [shape: f32[8,128], index: 4, kind: output, shape index: {}]
  %s5 = sld [smem:[#allocation0]]
  $region38: #{tpu_custom_call.1} parent=0
    _
  %s7 = ssub.s32 1, %s5
  %s8 = scalar_select 0, %s7, %s5
  $region1: #{tpu_custom_call.1} parent=0
    #allocation2 [shape = 'u8[4096]{0}', space=vmem, size = 0x1000, scoped, tag = 'input window, operand 0, single buffered']
    #allocation3 [shape = 's32[1]{0}', space=sflag, size = 0x4, scoped, tag = 'scoped memory for tpu_custom_call.1']
    #allocation4 [shape = 's32[1]{0}', space=sflag, size = 0x4, scoped, tag = 'scoped memory for tpu_custom_call.1']
    #allocation5 [shape = 'u8[4096]{0}', space=vmem, size = 0x1000, scoped, tag = 'input window, operand 1, single buffered']
    #allocation6 [shape = 's32[1]{0}', space=sflag, size = 0x4, scoped, tag = 'scoped memory for tpu_custom_call.1']
    #allocation7 [shape = 'u8[4096]{0}', space=vmem, size = 0x1000, scoped, tag = 'input window, operand 2, single buffered']
    #allocation8 [shape = 'u8[4096]{0}', space=vmem, size = 0x1000, scoped, tag = 'output window, operand 0, single buffered']
    %9 = vsyncpa [#allocation3], 0
    %10 = vsyncpa [#allocation6], 0
    %11 = vsyncpa [#allocation4], 0
    // Predicated region
    $region2: #{tpu_custom_call.1} parent=1 // pred_check
      _
    $region3: #{tpu_custom_call.1} parent=1 // pred_check_branch
      %13 = sbr.rel (0) target = $region5
    $region4: #{tpu_custom_call.1} parent=1 // pred_region
      %s15 = ssub.s32 128, 128
      %16 = vsyncadd [#allocation3], %s15
      %s18 = sshll.u32 [#allocation2], 4
      %s19 = int_to_ptr.vmem [resolvable:$true] %s18
      %21 = dma.hbm_to_vmem [thread:$0]  %s0, 128, %s19, [#allocation3]
    $region5: #{tpu_custom_call.1} parent=1 // pred_fallthru
      _
    // Predicated region
    $region6: #{tpu_custom_call.1} parent=1 // pred_check
      _
    $region7: #{tpu_custom_call.1} parent=1 // pred_check_branch
      %23 = sbr.rel (0) target = $region9
    $region8: #{tpu_custom_call.1} parent=1 // pred_region
      %s25 = ssub.s32 128, 128
      %26 = vsyncadd [#allocation6], %s25
      %s28 = sshll.u32 [#allocation5], 4
      %s29 = int_to_ptr.vmem [resolvable:$true] %s28
      %31 = dma.hbm_to_vmem [thread:$0]  %s1, 128, %s29, [#allocation6]
    $region9: #{tpu_custom_call.1} parent=1 // pred_fallthru
      _
    // Predicated region
    $region10: #{tpu_custom_call.1} parent=1 // pred_check
      _
    $region11: #{tpu_custom_call.1} parent=1 // pred_check_branch
      %33 = sbr.rel (0) target = $region13
    $region12: #{tpu_custom_call.1} parent=1 // pred_region
      %s35 = ssub.s32 128, 128
      %36 = vsyncadd [#allocation6], %s35
      %s38 = sshll.u32 [#allocation7], 4
      %s39 = int_to_ptr.vmem [resolvable:$true] %s38
      %41 = dma.hbm_to_vmem [thread:$0]  %s2, 128, %s39, [#allocation6]
    $region13: #{tpu_custom_call.1} parent=1 // pred_fallthru
      _
    // Predicated region
    $region14: #{tpu_custom_call.1} parent=1 // pred_check
      _
    $region15: #{tpu_custom_call.1} parent=1 // pred_check_branch
      %43 = sbr.rel (0) target = $region17
    $region16: #{tpu_custom_call.1} parent=1 // pred_region
      _
    $region17: #{tpu_custom_call.1} parent=1 // pred_fallthru
      _
    // Predicated region
    $region18: #{tpu_custom_call.1} parent=1 // pred_check
      _
    $region19: #{tpu_custom_call.1} parent=1 // pred_check_branch
      %45 = sbr.rel (0) target = $region21
    $region20: #{tpu_custom_call.1} parent=1 // pred_region
      %46 = dma.done [#allocation3], 128
    $region21: #{tpu_custom_call.1} parent=1 // pred_fallthru
      _
    // Predicated region
    $region22: #{tpu_custom_call.1} parent=1 // pred_check
      _
    $region23: #{tpu_custom_call.1} parent=1 // pred_check_branch
      %48 = sbr.rel (0) target = $region25
    $region24: #{tpu_custom_call.1} parent=1 // pred_region
      %49 = dma.done [#allocation6], 128
    $region25: #{tpu_custom_call.1} parent=1 // pred_fallthru
      _
    // Predicated region
    $region26: #{tpu_custom_call.1} parent=1 // pred_check
      _
    $region27: #{tpu_custom_call.1} parent=1 // pred_check_branch
      %51 = sbr.rel (0) target = $region29
    $region28: #{tpu_custom_call.1} parent=1 // pred_region
      %52 = dma.done [#allocation6], 128
    $region29: #{tpu_custom_call.1} parent=1 // pred_fallthru
      _
    %v53 = vld [vmem:[#allocation2] sm:$0xff]
    %v54 = vld [vmem:[#allocation5] sm:$0xff]
    %v55 = vld [vmem:[#allocation7] sm:$0xff]
    %v56 = vld [vmem:[%s3] sm:$0xff]
    %v57 = vrcp.pop %v56
    %v58 = vmul.f32 1.0, %v57
    %v59 = vmul.f32 %v54, %v58
    %v60 = vsub.f32 %v53, %v55
    %v61 = vmul.f32 %v60, %v58
    %v62 = vmul.f32 %v59, %v59
    %v63 = vmul.f32 %v61, %v61
    %v64 = vadd.f32 %v62, %v63
    %v65 = vmul.f32 %v64, 0.5
    %v66 = vlog2.pop %v59
    %v67 = vmul.f32 %v66, 0.6931472
    %v68 = vsub.f32 %v65, %v67
    %v69 = vsub.f32 %v68, 0.5
    %v70 = vadd.f32 %v69, 0.0
    %71 = vst [vmem:[#allocation8] sm:$0xff] %v70
    // Predicated region
    $region30: #{tpu_custom_call.1} parent=1 // pred_check
      _
    $region31: #{tpu_custom_call.1} parent=1 // pred_check_branch
      %73 = sbr.rel (0) target = $region33
    $region32: #{tpu_custom_call.1} parent=1 // pred_region
      %s75 = ssub.s32 128, 128
      %76 = vsyncadd [#allocation4], %s75
      %s78 = sshll.u32 [#allocation8], 4
      %s79 = int_to_ptr.vmem [resolvable:$true] %s78
      %81 = dma.vmem_to_hbm [thread:$0]  %s79, 128, %s4, [#allocation4]
    $region33: #{tpu_custom_call.1} parent=1 // pred_fallthru
      _
    // Predicated region
    $region34: #{tpu_custom_call.1} parent=1 // pred_check
      _
    $region35: #{tpu_custom_call.1} parent=1 // pred_check_branch
      %83 = sbr.rel (0) target = $region37
    $region36: #{tpu_custom_call.1} parent=1 // pred_region
      %84 = dma.done [#allocation4], 128
    $region37: #{tpu_custom_call.1} parent=1 // pred_fallthru
      _
    %85 = vsyncpa [#allocation3], 1
    %86 = vsyncpa [#allocation6], 1
    %87 = vsyncpa [#allocation4], 1

</llo_original>
